<compile_context>
chip_gen: v7x
topology: tpu7x:2x2x1
jax: 0.10.0
libtpu: 0.0.40
codegen_flags: <defaults>
</compile_context>

<pallas_src>
import functools

import jax
import jax.numpy as jnp
from jax.experimental import pallas as pl
from jax.experimental.pallas import tpu as pltpu


def _round_up(x: int, m: int) -> int:
    return ((x + m - 1) // m) * m


# ---------------------------------------------------------------------------
# Fused MLP kernel: all layers in one body, activations stay on-core as values.
# ---------------------------------------------------------------------------
def _fused_mlp_kernel(x_ref, *refs, n_layers: int):
    """refs = (w0, b0, ..., w{L-1}, b{L-1}, o_ref).

    x_ref : (tm, Din)          f32  (unpadded features; cast to bf16 in-kernel)
    w_i   : (K_i, N_i_pad)     bf16 (whole array, VMEM-resident, zero-padded cols/rows)
    b_i   : (1, N_i_pad)       f32
    o_ref : (tm, 1)            f32  (head output, column 0 of the padded last layer)
    """
    o_ref = refs[2 * n_layers]

    h = x_ref[...].astype(jnp.bfloat16)            # bf16 MXU input
    for i in range(n_layers):
        w_ref = refs[2 * i]
        b_ref = refs[2 * i + 1]
        # MXU matmul with f32 accumulation, f32 bias broadcast over the batch tile.
        y = jnp.dot(h, w_ref[...], preferred_element_type=jnp.float32) + b_ref[...]
        if i < n_layers - 1:
            # ReLU epilogue in f32; activation stays a value (no scratch store/load).
            # Padded columns are exactly 0 (zero W cols + zero b), so they stay 0.
            h = jnp.maximum(y, 0.0).astype(jnp.bfloat16)
        else:
            # Head: only column 0 is real -> (tm, 1) store, no write amplification.
            o_ref[...] = y[:, :1]


# ---------------------------------------------------------------------------
# Parameter init (PyTorch-style) and one-time packing (pad + cast, off the hot path).
# ---------------------------------------------------------------------------
def init_mlp_params(key, input_shape, hidden_layers):
    """PyTorch nn.Linear-style init: U(-1/sqrt(fan_in), 1/sqrt(fan_in)).

    Weights stored (in_features, out_features) so each layer is y = x @ W + b.
    """
    dims = [input_shape] + list(hidden_layers) + [1]
    params = []
    for i in range(len(dims) - 1):
        fan_in, fan_out = dims[i], dims[i + 1]
        key, kw, kb = jax.random.split(key, 3)
        bound = 1.0 / jnp.sqrt(jnp.float32(fan_in))
        w = jax.random.uniform(kw, (fan_in, fan_out), jnp.float32, -bound, bound)
        b = jax.random.uniform(kb, (fan_out,), jnp.float32, -bound, bound)
        params.append((w, b))
    return params


def pack_params(params, lane_pad: int = 128):
    """Zero-pad every layer's OUTPUT feature dim to a multiple of `lane_pad`; the first
    layer's K dim stays exact (x is read unpadded).  W -> bf16, b -> (1, N_pad) f32.

    lane_pad=128 matches v5e; for large hidden dims (>=256) on v6e/v7x, 256 keeps full
    MXU systolic passes.
    """
    dims = [params[0][0].shape[0]] + [w.shape[1] for (w, _) in params]
    dims_pad = [dims[0]] + [_round_up(d, lane_pad) for d in dims[1:]]
    packed = []
    for i, (w, b) in enumerate(params):
        din, dout = w.shape
        kp, np_ = dims_pad[i], dims_pad[i + 1]
        w_p = jnp.zeros((kp, np_), jnp.bfloat16).at[:din, :dout].set(w.astype(jnp.bfloat16))
        b_p = jnp.zeros((1, np_), jnp.float32).at[0, :dout].set(b)
        packed.append((w_p, b_p))
    return packed, dims, dims_pad


# ---------------------------------------------------------------------------
# Forward pass: one fused pallas_call over a batch grid.
# ---------------------------------------------------------------------------
def neural_network_forward(x, packed, dims, dims_pad, *, tm=256):
    B, Din = x.shape
    assert Din == dims[0]
    n_layers = len(packed)

    # Batch tile: big by default (amortize per-grid-step overhead, fill the MXU),
    # clamped for small batches; always a multiple of 16 (bf16 sublane packing).
    tm = _round_up(max(16, min(tm, _round_up(B, 16))), 16)
    # v7x has 2 TensorCores: for large batches make sure the "parallel" axis has >=2 steps.
    if pl.cdiv(B, tm) == 1 and B > 128:
        tm = _round_up(pl.cdiv(B, 2), 16)
    n_tiles = pl.cdiv(B, tm)

    # --- VMEM budget (explicit, with headroom; 48 MiB cap is safe on v5e/v6e/v7x). ---
    weight_bytes = sum(w.size * 2 + b.size * 4 for (w, b) in packed)
    max_pad = max(dims_pad[1:])
    needed = (2 * weight_bytes              # worst case: double-buffered fallback path
              + 2 * tm * Din * 4            # x tile (f32), double-buffered
              + 2 * tm * 4                  # (tm, 1) output tile, double-buffered
              + 4 * tm * max_pad * 4)       # headroom for spilled activation values
    vmem_limit = int(min(max(needed + (4 << 20), 32 << 20), 48 << 20))
    # TODO(synk): if padded weights alone exceed ~48 MiB, add a K-reduction ("arbitrary")
    # grid axis and tile the weights instead of whole-array VMEM residency.

    flops = 2 * B * sum(dims_pad[i] * dims_pad[i + 1] for i in range(n_layers))
    bytes_accessed = B * Din * 4 + weight_bytes + B * 4
    cost = pl.CostEstimate(flops=flops, transcendentals=0, bytes_accessed=bytes_accessed)

    kernel = functools.partial(_fused_mlp_kernel, n_layers=n_layers)

    def build_and_run(single_buffer_weights: bool):
        in_specs = [pl.BlockSpec((tm, Din), lambda i: (i, 0))]   # lane dim == full Din
        flat_wb = []
        for (w_p, b_p) in packed:
            flat_wb += [w_p, b_p]
            for arr in (w_p, b_p):
                if single_buffer_weights:
                    # Constant block index -> DMA'd once; Buffered(1) drops the 2nd buffer.
                    spec = pl.BlockSpec(arr.shape, lambda i: (0, 0),
                                        pipeline_mode=pl.Buffered(1))
                else:
                    spec = pl.BlockSpec(arr.shape, lambda i: (0, 0))
                in_specs.append(spec)

        return pl.pallas_call(
            kernel,
            out_shape=jax.ShapeDtypeStruct((B, 1), jnp.float32),
            grid=(n_tiles,),
            in_specs=in_specs,
            out_specs=pl.BlockSpec((tm, 1), lambda i: (i, 0)),
            compiler_params=pltpu.CompilerParams(
                dimension_semantics=("parallel",),
                vmem_limit_bytes=vmem_limit,
            ),
            cost_estimate=cost,
        )(x, *flat_wb)

    try:
        return build_and_run(True)
    except Exception:
        # Fallback for jax builds without BlockSpec pipeline_mode / Buffered(1) support:
        # identical math, default double-buffered (but DMA-elided) weight blocks.
        return build_and_run(False)


# ---------------------------------------------------------------------------
# Demo + correctness check
# ---------------------------------------------------------------------------
def _reference_bf16(x, params):
    """Mirrors the kernel dtype path: bf16 matmul inputs/activations, f32 accumulation."""
    h = x
    n = len(params)
    for i, (w, b) in enumerate(params):
        h = jnp.dot(h.astype(jnp.bfloat16), w.astype(jnp.bfloat16),
                    preferred_element_type=jnp.float32) + b
        if i != n - 1:
            h = jnp.maximum(h, 0.0)
    return h


def _reference_f32(x, params):
    h = x
    n = len(params)
    for i, (w, b) in enumerate(params):
        h = h @ w + b
        if i != n - 1:
            h = jnp.maximum(h, 0.0)
    return h


if __name__ == "__main__":
    key = jax.random.PRNGKey(0)
    k_params, k_x, k_x2 = jax.random.split(key, 3)

    input_shape = 32
    hidden_layers = [64, 32]
    batch = 8

    params = init_mlp_params(k_params, input_shape, hidden_layers)
    packed, dims, dims_pad = pack_params(params)

    # --- small demo batch (single tile) ---
    x = jax.random.normal(k_x, (batch, input_shape), jnp.float32)
    out = neural_network_forward(x, packed, dims, dims_pad)
    out = jax.block_until_ready(out)
    assert out.shape == (batch, 1)
    assert jnp.allclose(out, _reference_bf16(x, params), atol=2e-3, rtol=2e-3)
    assert jnp.allclose(out, _reference_f32(x, params), atol=5e-2, rtol=5e-2)

    # --- multi-tile + trailing partial tile path (40 rows, tm=16 -> 3 grid steps) ---
    x2 = jax.random.normal(k_x2, (40, input_shape), jnp.float32)
    out2 = neural_network_forward(x2, packed, dims, dims_pad, tm=16)
    out2 = jax.block_until_ready(out2)
    assert out2.shape == (40, 1)
    assert jnp.allclose(out2, _reference_bf16(x2, params), atol=2e-3, rtol=2e-3)
    assert jnp.allclose(out2, _reference_f32(x2, params), atol=5e-2, rtol=5e-2)

    print("KERNEL_OK")
</pallas_src>

<mosaic_0001>
module attributes {stable_mosaic.version = 11 : i64} {
  func.func @_fused_mlp_kernel(%arg0: i32, %arg1: memref<16x32xf32, #tpu.memory_space<vmem>>, %arg2: memref<32x128xbf16, #tpu.memory_space<vmem>>, %arg3: memref<1x128xf32, #tpu.memory_space<vmem>>, %arg4: memref<128x128xbf16, #tpu.memory_space<vmem>>, %arg5: memref<1x128xf32, #tpu.memory_space<vmem>>, %arg6: memref<128x128xbf16, #tpu.memory_space<vmem>>, %arg7: memref<1x128xf32, #tpu.memory_space<vmem>>, %arg8: memref<16x1xf32, #tpu.memory_space<vmem>>) attributes {dimension_semantics = [#tpu.dimension_semantics<parallel>], iteration_bounds = array<i64: 1>, scalar_prefetch = 0 : i64, scratch_operands = 0 : i64, tpu.core_type = #tpu.core_type<tc>, window_params = [{transform_indices = @transform_0, window_bounds = array<i64: 16, 32>}, {pipeline_mode = #tpu.pipeline_mode<synchronous>, transform_indices = @transform_1, window_bounds = array<i64: 32, 128>}, {pipeline_mode = #tpu.pipeline_mode<synchronous>, transform_indices = @transform_2, window_bounds = array<i64: 1, 128>}, {pipeline_mode = #tpu.pipeline_mode<synchronous>, transform_indices = @transform_3, window_bounds = array<i64: 128, 128>}, {pipeline_mode = #tpu.pipeline_mode<synchronous>, transform_indices = @transform_4, window_bounds = array<i64: 1, 128>}, {pipeline_mode = #tpu.pipeline_mode<synchronous>, transform_indices = @transform_5, window_bounds = array<i64: 128, 128>}, {pipeline_mode = #tpu.pipeline_mode<synchronous>, transform_indices = @transform_6, window_bounds = array<i64: 1, 128>}, {transform_indices = @transform_7, window_bounds = array<i64: 16, 1>}]} {
    %c0 = arith.constant 0 : index
    %c0_0 = arith.constant 0 : index
    %0 = vector.load %arg1[%c0, %c0_0] : memref<16x32xf32, #tpu.memory_space<vmem>>, vector<16x32xf32>
    %1 = arith.truncf %0 : vector<16x32xf32> to vector<16x32xbf16>
    %c0_1 = arith.constant 0 : index
    %c0_2 = arith.constant 0 : index
    %2 = vector.load %arg2[%c0_1, %c0_2] : memref<32x128xbf16, #tpu.memory_space<vmem>>, vector<32x128xbf16>
    %cst = arith.constant dense<0.000000e+00> : vector<16x128xf32>
    %3 = tpu.matmul %1, %2, %cst {dimension_numbers = #tpu.dot_dimension_numbers<[1], [0], [0], [1], [0, 0, 1, 1], [], []>} : vector<16x32xbf16>, vector<32x128xbf16>, vector<16x128xf32> -> vector<16x128xf32>
    %c0_3 = arith.constant 0 : index
    %c0_4 = arith.constant 0 : index
    %4 = vector.load %arg3[%c0_3, %c0_4] : memref<1x128xf32, #tpu.memory_space<vmem>>, vector<1x128xf32>
    %5 = vector.broadcast %4 : vector<1x128xf32> to vector<16x128xf32>
    %6 = arith.addf %3, %5 : vector<16x128xf32>
    %cst_5 = arith.constant 0.000000e+00 : f32
    %7 = vector.broadcast %cst_5 : f32 to vector<16x128xf32>
    %8 = arith.maximumf %6, %7 : vector<16x128xf32>
    %9 = arith.truncf %8 : vector<16x128xf32> to vector<16x128xbf16>
    %c0_6 = arith.constant 0 : index
    %c0_7 = arith.constant 0 : index
    %10 = vector.load %arg4[%c0_6, %c0_7] : memref<128x128xbf16, #tpu.memory_space<vmem>>, vector<128x128xbf16>
    %cst_8 = arith.constant dense<0.000000e+00> : vector<16x128xf32>
    %11 = tpu.matmul %9, %10, %cst_8 {dimension_numbers = #tpu.dot_dimension_numbers<[1], [0], [0], [1], [0, 0, 1, 1], [], []>} : vector<16x128xbf16>, vector<128x128xbf16>, vector<16x128xf32> -> vector<16x128xf32>
    %c0_9 = arith.constant 0 : index
    %c0_10 = arith.constant 0 : index
    %12 = vector.load %arg5[%c0_9, %c0_10] : memref<1x128xf32, #tpu.memory_space<vmem>>, vector<1x128xf32>
    %13 = vector.broadcast %12 : vector<1x128xf32> to vector<16x128xf32>
    %14 = arith.addf %11, %13 : vector<16x128xf32>
    %cst_11 = arith.constant 0.000000e+00 : f32
    %15 = vector.broadcast %cst_11 : f32 to vector<16x128xf32>
    %16 = arith.maximumf %14, %15 : vector<16x128xf32>
    %17 = arith.truncf %16 : vector<16x128xf32> to vector<16x128xbf16>
    %c0_12 = arith.constant 0 : index
    %c0_13 = arith.constant 0 : index
    %18 = vector.load %arg6[%c0_12, %c0_13] : memref<128x128xbf16, #tpu.memory_space<vmem>>, vector<128x128xbf16>
    %cst_14 = arith.constant dense<0.000000e+00> : vector<16x128xf32>
    %19 = tpu.matmul %17, %18, %cst_14 {dimension_numbers = #tpu.dot_dimension_numbers<[1], [0], [0], [1], [0, 0, 1, 1], [], []>} : vector<16x128xbf16>, vector<128x128xbf16>, vector<16x128xf32> -> vector<16x128xf32>
    %c0_15 = arith.constant 0 : index
    %c0_16 = arith.constant 0 : index
    %20 = vector.load %arg7[%c0_15, %c0_16] : memref<1x128xf32, #tpu.memory_space<vmem>>, vector<1x128xf32>
    %21 = vector.broadcast %20 : vector<1x128xf32> to vector<16x128xf32>
    %22 = arith.addf %19, %21 : vector<16x128xf32>
    %23 = vector.extract_strided_slice %22 {offsets = [0, 0], sizes = [16, 1], strides = [1, 1]} : vector<16x128xf32> to vector<16x1xf32>
    %c0_17 = arith.constant 0 : index
    %c0_18 = arith.constant 0 : index
    %24 = vector.load %arg8[%c0_17, %c0_18] : memref<16x1xf32, #tpu.memory_space<vmem>>, vector<16x1xf32>
    tpu.vector_store %arg8[%c0_17, %c0_18], %23 {strides = array<i32>} : memref<16x1xf32, #tpu.memory_space<vmem>>, vector<16x1xf32>,
    return
  }
  func.func @transform_0(%arg0: i32) -> (i32, i32) {
    %c0_i32 = arith.constant 0 : i32
    %c0_i32_0 = arith.constant 0 : i32
    return %arg0, %c0_i32 : i32, i32
  }
  func.func @transform_1(%arg0: i32) -> (i32, i32) {
    %c0_i32 = arith.constant 0 : i32
    %c0_i32_0 = arith.constant 0 : i32
    %c0_i32_1 = arith.constant 0 : i32
    return %c0_i32, %c0_i32_0 : i32, i32
  }
  func.func @transform_2(%arg0: i32) -> (i32, i32) {
    %c0_i32 = arith.constant 0 : i32
    %c0_i32_0 = arith.constant 0 : i32
    %c0_i32_1 = arith.constant 0 : i32
    return %c0_i32, %c0_i32_0 : i32, i32
  }
  func.func @transform_3(%arg0: i32) -> (i32, i32) {
    %c0_i32 = arith.constant 0 : i32
    %c0_i32_0 = arith.constant 0 : i32
    %c0_i32_1 = arith.constant 0 : i32
    return %c0_i32, %c0_i32_0 : i32, i32
  }
  func.func @transform_4(%arg0: i32) -> (i32, i32) {
    %c0_i32 = arith.constant 0 : i32
    %c0_i32_0 = arith.constant 0 : i32
    %c0_i32_1 = arith.constant 0 : i32
    return %c0_i32, %c0_i32_0 : i32, i32
  }
  func.func @transform_5(%arg0: i32) -> (i32, i32) {
    %c0_i32 = arith.constant 0 : i32
    %c0_i32_0 = arith.constant 0 : i32
    %c0_i32_1 = arith.constant 0 : i32
    return %c0_i32, %c0_i32_0 : i32, i32
  }
  func.func @transform_6(%arg0: i32) -> (i32, i32) {
    %c0_i32 = arith.constant 0 : i32
    %c0_i32_0 = arith.constant 0 : i32
    %c0_i32_1 = arith.constant 0 : i32
    return %c0_i32, %c0_i32_0 : i32, i32
  }
  func.func @transform_7(%arg0: i32) -> (i32, i32) {
    %c0_i32 = arith.constant 0 : i32
    %c0_i32_0 = arith.constant 0 : i32
    return %arg0, %c0_i32 : i32, i32
  }
}

module attributes {stable_mosaic.version = 11 : i64} {
  func.func @_fused_mlp_kernel(%arg0: i32, %arg1: memref<16x32xf32, #tpu.memory_space<vmem>>, %arg2: memref<32x128xbf16, #tpu.memory_space<vmem>>, %arg3: memref<1x128xf32, #tpu.memory_space<vmem>>, %arg4: memref<128x128xbf16, #tpu.memory_space<vmem>>, %arg5: memref<1x128xf32, #tpu.memory_space<vmem>>, %arg6: memref<128x128xbf16, #tpu.memory_space<vmem>>, %arg7: memref<1x128xf32, #tpu.memory_space<vmem>>, %arg8: memref<16x1xf32, #tpu.memory_space<vmem>>) attributes {dimension_semantics = [#tpu.dimension_semantics<parallel>], iteration_bounds = array<i64: 1>, scalar_prefetch = 0 : i64, scratch_operands = 0 : i64, tpu.core_type = #tpu.core_type<tc>, window_params = [{transform_indices = @transform_0, window_bounds = array<i64: 16, 32>}, {pipeline_mode = #tpu.pipeline_mode<synchronous>, transform_indices = @transform_1, window_bounds = array<i64: 32, 128>}, {pipeline_mode = #tpu.pipeline_mode<synchronous>, transform_indices = @transform_2, window_bounds = array<i64: 1, 128>}, {pipeline_mode = #tpu.pipeline_mode<synchronous>, transform_indices = @transform_3, window_bounds = array<i64: 128, 128>}, {pipeline_mode = #tpu.pipeline_mode<synchronous>, transform_indices = @transform_4, window_bounds = array<i64: 1, 128>}, {pipeline_mode = #tpu.pipeline_mode<synchronous>, transform_indices = @transform_5, window_bounds = array<i64: 128, 128>}, {pipeline_mode = #tpu.pipeline_mode<synchronous>, transform_indices = @transform_6, window_bounds = array<i64: 1, 128>}, {transform_indices = @transform_7, window_bounds = array<i64: 16, 1>}]} {
    %c0 = arith.constant 0 : index
    %c0_0 = arith.constant 0 : index
    %0 = vector.load %arg1[%c0, %c0_0] : memref<16x32xf32, #tpu.memory_space<vmem>>, vector<16x32xf32>
    %1 = arith.truncf %0 : vector<16x32xf32> to vector<16x32xbf16>
    %c0_1 = arith.constant 0 : index
    %c0_2 = arith.constant 0 : index
    %2 = vector.load %arg2[%c0_1, %c0_2] : memref<32x128xbf16, #tpu.memory_space<vmem>>, vector<32x128xbf16>
    %cst = arith.constant dense<0.000000e+00> : vector<16x128xf32>
    %3 = tpu.matmul %1, %2, %cst {dimension_numbers = #tpu.dot_dimension_numbers<[1], [0], [0], [1], [0, 0, 1, 1], [], []>} : vector<16x32xbf16>, vector<32x128xbf16>, vector<16x128xf32> -> vector<16x128xf32>
    %c0_3 = arith.constant 0 : index
    %c0_4 = arith.constant 0 : index
    %4 = vector.load %arg3[%c0_3, %c0_4] : memref<1x128xf32, #tpu.memory_space<vmem>>, vector<1x128xf32>
    %5 = vector.broadcast %4 : vector<1x128xf32> to vector<16x128xf32>
    %6 = arith.addf %3, %5 : vector<16x128xf32>
    %cst_5 = arith.constant 0.000000e+00 : f32
    %7 = vector.broadcast %cst_5 : f32 to vector<16x128xf32>
    %8 = arith.maximumf %6, %7 : vector<16x128xf32>
    %9 = arith.truncf %8 : vector<16x128xf32> to vector<16x128xbf16>
    %c0_6 = arith.constant 0 : index
    %c0_7 = arith.constant 0 : index
    %10 = vector.load %arg4[%c0_6, %c0_7] : memref<128x128xbf16, #tpu.memory_space<vmem>>, vector<128x128xbf16>
    %cst_8 = arith.constant dense<0.000000e+00> : vector<16x128xf32>
    %11 = tpu.matmul %9, %10, %cst_8 {dimension_numbers = #tpu.dot_dimension_numbers<[1], [0], [0], [1], [0, 0, 1, 1], [], []>} : vector<16x128xbf16>, vector<128x128xbf16>, vector<16x128xf32> -> vector<16x128xf32>
    %c0_9 = arith.constant 0 : index
    %c0_10 = arith.constant 0 : index
    %12 = vector.load %arg5[%c0_9, %c0_10] : memref<1x128xf32, #tpu.memory_space<vmem>>, vector<1x128xf32>
    %13 = vector.broadcast %12 : vector<1x128xf32> to vector<16x128xf32>
    %14 = arith.addf %11, %13 : vector<16x128xf32>
    %cst_11 = arith.constant 0.000000e+00 : f32
    %15 = vector.broadcast %cst_11 : f32 to vector<16x128xf32>
    %16 = arith.maximumf %14, %15 : vector<16x128xf32>
    %17 = arith.truncf %16 : vector<16x128xf32> to vector<16x128xbf16>
    %c0_12 = arith.constant 0 : index
    %c0_13 = arith.constant 0 : index
    %18 = vector.load %arg6[%c0_12, %c0_13] : memref<128x128xbf16, #tpu.memory_space<vmem>>, vector<128x128xbf16>
    %cst_14 = arith.constant dense<0.000000e+00> : vector<16x128xf32>
    %19 = tpu.matmul %17, %18, %cst_14 {dimension_numbers = #tpu.dot_dimension_numbers<[1], [0], [0], [1], [0, 0, 1, 1], [], []>} : vector<16x128xbf16>, vector<128x128xbf16>, vector<16x128xf32> -> vector<16x128xf32>
    %c0_15 = arith.constant 0 : index
    %c0_16 = arith.constant 0 : index
    %20 = vector.load %arg7[%c0_15, %c0_16] : memref<1x128xf32, #tpu.memory_space<vmem>>, vector<1x128xf32>
    %21 = vector.broadcast %20 : vector<1x128xf32> to vector<16x128xf32>
    %22 = arith.addf %19, %21 : vector<16x128xf32>
    %23 = vector.extract_strided_slice %22 {offsets = [0, 0], sizes = [16, 1], strides = [1, 1]} : vector<16x128xf32> to vector<16x1xf32>
    %c0_17 = arith.constant 0 : index
    %c0_18 = arith.constant 0 : index
    %24 = vector.load %arg8[%c0_17, %c0_18] : memref<16x1xf32, #tpu.memory_space<vmem>>, vector<16x1xf32>
    tpu.vector_store %arg8[%c0_17, %c0_18], %23 {strides = array<i32>} : memref<16x1xf32, #tpu.memory_space<vmem>>, vector<16x1xf32>,
    return
  }
  func.func @transform_0(%arg0: i32) -> (i32, i32) {
    %c0_i32 = arith.constant 0 : i32
    %c0_i32_0 = arith.constant 0 : i32
    return %arg0, %c0_i32 : i32, i32
  }
  func.func @transform_1(%arg0: i32) -> (i32, i32) {
    %c0_i32 = arith.constant 0 : i32
    %c0_i32_0 = arith.constant 0 : i32
    %c0_i32_1 = arith.constant 0 : i32
    return %c0_i32, %c0_i32_0 : i32, i32
  }
  func.func @transform_2(%arg0: i32) -> (i32, i32) {
    %c0_i32 = arith.constant 0 : i32
    %c0_i32_0 = arith.constant 0 : i32
    %c0_i32_1 = arith.constant 0 : i32
    return %c0_i32, %c0_i32_0 : i32, i32
  }
  func.func @transform_3(%arg0: i32) -> (i32, i32) {
    %c0_i32 = arith.constant 0 : i32
    %c0_i32_0 = arith.constant 0 : i32
    %c0_i32_1 = arith.constant 0 : i32
    return %c0_i32, %c0_i32_0 : i32, i32
  }
  func.func @transform_4(%arg0: i32) -> (i32, i32) {
    %c0_i32 = arith.constant 0 : i32
    %c0_i32_0 = arith.constant 0 : i32
    %c0_i32_1 = arith.constant 0 : i32
    return %c0_i32, %c0_i32_0 : i32, i32
  }
  func.func @transform_5(%arg0: i32) -> (i32, i32) {
    %c0_i32 = arith.constant 0 : i32
    %c0_i32_0 = arith.constant 0 : i32
    %c0_i32_1 = arith.constant 0 : i32
    return %c0_i32, %c0_i32_0 : i32, i32
  }
  func.func @transform_6(%arg0: i32) -> (i32, i32) {
    %c0_i32 = arith.constant 0 : i32
    %c0_i32_0 = arith.constant 0 : i32
    %c0_i32_1 = arith.constant 0 : i32
    return %c0_i32, %c0_i32_0 : i32, i32
  }
  func.func @transform_7(%arg0: i32) -> (i32, i32) {
    %c0_i32 = arith.constant 0 : i32
    %c0_i32_0 = arith.constant 0 : i32
    return %arg0, %c0_i32 : i32, i32
  }
}

</mosaic_0001>

<llo_original>
// kernel: tpu_custom_call.1
$region0: #{tpu_custom_call.1}
  #allocation0 [shape = 'u32[]', space=smem, size = 0x4, offset = 0x4, fixed_abs, tag = 'smem constant byte address 0x4 - core index']
  #allocation1 [shape = 'u32[144,128]{1,0:T(1,128)}', space=vmem, size = 0x12000, scoped, tag = 'internal scratch']
  %s0 = inlined_call_operand.hbm [shape: f32[8,32], index: 0, kind: input, shape index: {}]
  %s1 = inlined_call_operand.hbm [shape: bf16[32,128], index: 1, kind: input, shape index: {}]
  %s2 = inlined_call_operand.vmem [shape: f32[1,128], index: 2, kind: input, shape index: {}]
  %s3 = inlined_call_operand.hbm [shape: bf16[128,128], index: 3, kind: input, shape index: {}]
  %s4 = inlined_call_operand.vmem [shape: f32[1,128], index: 4, kind: input, shape index: {}]
  %s5 = inlined_call_operand.hbm [shape: bf16[128,128], index: 5, kind: input, shape index: {}]
  %s6 = inlined_call_operand.vmem [shape: f32[1,128], index: 6, kind: input, shape index: {}]
  %s7 = inlined_call_operand.vmem [shape: f32[8,1], index: 7, kind: output, shape index: {}]
  %s8 = sld [smem:[#allocation0]]
  $region88: #{tpu_custom_call.1} parent=0
    _
  %s10 = ssub.s32 1, %s8
  %s11 = scalar_select 0, %s10, %s8
  $region1: #{tpu_custom_call.1} parent=0
    #allocation2 [shape = 'u8[8192]{0}', space=vmem, size = 0x2000, scoped, tag = 'input window, operand 0, single buffered']
    #allocation3 [shape = 's32[1]{0}', space=sflag, size = 0x4, scoped, tag = 'scoped memory for tpu_custom_call.1']
    #allocation4 [shape = 'u8[8192]{0}', space=vmem, size = 0x2000, scoped, tag = 'input window, operand 1, single buffered']
    #allocation5 [shape = 's32[1]{0}', space=sflag, size = 0x4, scoped, tag = 'scoped memory for tpu_custom_call.1']
    #allocation6 [shape = 'u8[32768]{0}', space=vmem, size = 0x8000, scoped, tag = 'input window, operand 3, single buffered']
    #allocation7 [shape = 'u8[32768]{0}', space=vmem, size = 0x8000, scoped, tag = 'input window, operand 5, single buffered']
    #allocation8 [shape = 's32[1]{0}', space=sflag, size = 0x4, scoped, tag = 'scoped memory for tpu_custom_call.1']
    #allocation9 [shape = 'u8[8192]{0}', space=vmem, size = 0x2000, scoped, tag = 'output window, operand 0, single buffered']
    %12 = vsyncpa [#allocation3], 0
    %13 = vsyncpa [#allocation5], 0
    %14 = vsyncpa [#allocation8], 0
    // Predicated region
    $region2: #{tpu_custom_call.1} parent=1 // pred_check
      _
    $region3: #{tpu_custom_call.1} parent=1 // pred_check_branch
      %16 = sbr.rel (0) target = $region5
    $region4: #{tpu_custom_call.1} parent=1 // pred_region
      %s18 = ssub.s32 256, 128
      %19 = vsyncadd [#allocation3], %s18
      %s20 = sshll.u32 [#allocation2], 4
      %s21 = int_to_ptr.vmem [resolvable:$true] %s20
      %26 = dma.hbm_to_vmem [thread:$0]  %s0, 128, %s21, [#allocation3], 128, 128, 8
    $region5: #{tpu_custom_call.1} parent=1 // pred_fallthru
      _
    // Predicated region
    $region6: #{tpu_custom_call.1} parent=1 // pred_check
      _
    $region7: #{tpu_custom_call.1} parent=1 // pred_check_branch
      %28 = sbr.rel (0) target = $region9
    $region8: #{tpu_custom_call.1} parent=1 // pred_region
      %s30 = ssub.s32 256, 256
      %31 = vsyncadd [#allocation5], %s30
      %s32 = sshll.u32 [#allocation4], 4
      %s33 = int_to_ptr.vmem [resolvable:$true] %s32
      %38 = dma.hbm_to_vmem [thread:$0]  %s1, 256, %s33, [#allocation5], 64, 64, 4
    $region9: #{tpu_custom_call.1} parent=1 // pred_fallthru
      _
    // Predicated region
    $region10: #{tpu_custom_call.1} parent=1 // pred_check
      _
    $region11: #{tpu_custom_call.1} parent=1 // pred_check_branch
      %40 = sbr.rel (0) target = $region13
    $region12: #{tpu_custom_call.1} parent=1 // pred_region
      _
    $region13: #{tpu_custom_call.1} parent=1 // pred_fallthru
      _
    // Predicated region
    $region14: #{tpu_custom_call.1} parent=1 // pred_check
      _
    $region15: #{tpu_custom_call.1} parent=1 // pred_check_branch
      %42 = sbr.rel (0) target = $region17
    $region16: #{tpu_custom_call.1} parent=1 // pred_region
      %s44 = ssub.s32 1024, 1024
      %45 = vsyncadd [#allocation5], %s44
      %s46 = sshll.u32 [#allocation6], 4
      %s47 = int_to_ptr.vmem [resolvable:$true] %s46
      %52 = dma.hbm_to_vmem [thread:$0]  %s3, 1024, %s47, [#allocation5], 64, 64, 4
    $region17: #{tpu_custom_call.1} parent=1 // pred_fallthru
      _
    // Predicated region
    $region18: #{tpu_custom_call.1} parent=1 // pred_check
      _
    $region19: #{tpu_custom_call.1} parent=1 // pred_check_branch
      %54 = sbr.rel (0) target = $region21
    $region20: #{tpu_custom_call.1} parent=1 // pred_region
      _
    $region21: #{tpu_custom_call.1} parent=1 // pred_fallthru
      _
    // Predicated region
    $region22: #{tpu_custom_call.1} parent=1 // pred_check
      _
    $region23: #{tpu_custom_call.1} parent=1 // pred_check_branch
      %56 = sbr.rel (0) target = $region25
    $region24: #{tpu_custom_call.1} parent=1 // pred_region
      %s58 = ssub.s32 1024, 1024
      %59 = vsyncadd [#allocation8], %s58
      %s60 = sshll.u32 [#allocation7], 4
      %s61 = int_to_ptr.vmem [resolvable:$true] %s60
      %66 = dma.hbm_to_vmem [thread:$0]  %s5, 1024, %s61, [#allocation8], 64, 64, 4
    $region25: #{tpu_custom_call.1} parent=1 // pred_fallthru
      _
    // Predicated region
    $region26: #{tpu_custom_call.1} parent=1 // pred_check
      _
    $region27: #{tpu_custom_call.1} parent=1 // pred_check_branch
      %68 = sbr.rel (0) target = $region29
    $region28: #{tpu_custom_call.1} parent=1 // pred_region
      _
    $region29: #{tpu_custom_call.1} parent=1 // pred_fallthru
      _
    // Predicated region
    $region30: #{tpu_custom_call.1} parent=1 // pred_check
      _
    $region31: #{tpu_custom_call.1} parent=1 // pred_check_branch
      %70 = sbr.rel (0) target = $region33
    $region32: #{tpu_custom_call.1} parent=1 // pred_region
      %71 = dma.done [#allocation3], 256
    $region33: #{tpu_custom_call.1} parent=1 // pred_fallthru
      _
    // Predicated region
    $region34: #{tpu_custom_call.1} parent=1 // pred_check
      _
    $region35: #{tpu_custom_call.1} parent=1 // pred_check_branch
      %73 = sbr.rel (0) target = $region37
    $region36: #{tpu_custom_call.1} parent=1 // pred_region
      %74 = dma.done [#allocation5], 256
    $region37: #{tpu_custom_call.1} parent=1 // pred_fallthru
      _
    // Predicated region
    $region38: #{tpu_custom_call.1} parent=1 // pred_check
      _
    $region39: #{tpu_custom_call.1} parent=1 // pred_check_branch
      %76 = sbr.rel (0) target = $region41
    $region40: #{tpu_custom_call.1} parent=1 // pred_region
      %77 = dma.done [#allocation5], 1024
    $region41: #{tpu_custom_call.1} parent=1 // pred_fallthru
      _
    // Predicated region
    $region42: #{tpu_custom_call.1} parent=1 // pred_check
      _
    $region43: #{tpu_custom_call.1} parent=1 // pred_check_branch
      %79 = sbr.rel (0) target = $region45
    $region44: #{tpu_custom_call.1} parent=1 // pred_region
      %80 = dma.done [#allocation8], 1024
    $region45: #{tpu_custom_call.1} parent=1 // pred_fallthru
      _
    %v82 = vld [vmem:[#allocation2] sm:$0xff]
    %v83 = vld [vmem:[#allocation2 + $0x8] sm:$0xff]
    %v84 = vpack.c.bf16 %v83, %v82
    %v85 = vld [vmem:[#allocation4] sm:$0xf]
    %v86 = vld [vmem:[#allocation4 + $0x4] sm:$0xf]
    %v87 = vld [vmem:[#allocation4 + $0x8] sm:$0xf]
    %v88 = vld [vmem:[#allocation4 + $0xc] sm:$0xf]
    %v89 = vld [vmem:[%s2] sm:$0x1]
    %v91 = vlaneseq
    %v92 = vshrl.u32 %v91, 7
    %v93 = vsub.s32 0, %v92
    %v94 = vrot.slane %v89, %v93
    %v100 = vunpack.c.l.b16 %v85
    %v101 = vunpack.c.l.b16 %v86
    %v102 = vunpack.c.l.b16 %v87
    %v103 = vunpack.c.l.b16 %v88
    %v104 = vpack.c.b16 %v101, %v100
    %v105 = vpack.c.b16 %v103, %v102
    %vm108 = vcmask 261120
    %v110 = vsel %vm108, %v84, 0
    %112 = vmatprep.subr.bf16.mxu0 0
    %113 = vmatpush1.bf16.msra.mxu0 %v104
    %114 = vmatprep.subr.bf16.mxu0 0
    %115 = vmatpush1.bf16.msra.mxu0 %v105
    %116 = vmatprep.subr.bf16.mxu0 0
    %117 = vmatpush1.bf16.msra.mxu0 0
    %118 = vmatprep.subr.bf16.mxu0 0
    %119 = vmatpush1.bf16.msra.mxu0 0
    %120 = vmatprep.subr.bf16.mxu0 0
    %121 = vmatpush1.bf16.msra.mxu0 0
    %122 = vmatprep.subr.bf16.mxu0 0
    %123 = vmatpush1.bf16.msra.mxu0 0
    %124 = vmatprep.subr.bf16.mxu0 0
    %125 = vmatpush1.bf16.msra.mxu0 0
    %126 = vmatprep.subr.bf16.mxu0 0
    %127 = vmatpush1.bf16.msra.mxu0 0
    %128 = vmatprep.subr.bf16.mxu0 0
    %129 = vmatpush1.bf16.msra.mxu0 0
    %130 = vmatprep.subr.bf16.mxu0 0
    %131 = vmatpush1.bf16.msra.mxu0 0
    %132 = vmatprep.subr.bf16.mxu0 0
    %133 = vmatpush1.bf16.msra.mxu0 0
    %134 = vmatprep.subr.bf16.mxu0 0
    %135 = vmatpush1.bf16.msra.mxu0 0
    %136 = vmatprep.subr.bf16.mxu0 0
    %137 = vmatpush1.bf16.msra.mxu0 0
    %138 = vmatprep.subr.bf16.mxu0 0
    %139 = vmatpush1.bf16.msra.mxu0 0
    %140 = vmatprep.subr.bf16.mxu0 0
    %141 = vmatpush1.bf16.msra.mxu0 0
    %142 = vmatprep.subr.bf16.mxu0 0
    %143 = vmatpush1.bf16.msra.mxu0 0
    %144 = vmatprep.mubr.bf16.mxu0 0
    %145 = vmatmul.mubr.bf16.gmra.mrb[0].mxu0 %v110
    %v146 = vpop.f32.mrb[0].mxu0
    %v147 = vadd.f32 %v94, %v146
    %v148 = vpop.f32.mrb[0].mxu0
    %v149 = vpop.f32.mrb[0].mxu0
    %v150 = vadd.f32 %v94, %v149
    %v151 = vpop.f32.mrb[0].mxu0
    %152 = vdwg.mxu0
    %v153 = vmax.f32 %v147, 0.0
    %v154 = vmax.f32 %v150, 0.0
    %v155 = vpack.c.bf16 %v154, %v153
    %v156 = vld [vmem:[#allocation6] sm:$0xf]
    %v157 = vld [vmem:[#allocation6 + $0x4] sm:$0xf]
    %v158 = vld [vmem:[#allocation6 + $0x8] sm:$0xf]
    %v159 = vld [vmem:[#allocation6 + $0xc] sm:$0xf]
    %v160 = vld [vmem:[#allocation6 + $0x10] sm:$0xf]
    %v161 = vld [vmem:[#allocation6 + $0x14] sm:$0xf]
    %v162 = vld [vmem:[#allocation6 + $0x18] sm:$0xf]
    %v163 = vld [vmem:[#allocation6 + $0x1c] sm:$0xf]
    %v164 = vld [vmem:[#allocation6 + $0x20] sm:$0xf]
    %v165 = vld [vmem:[#allocation6 + $0x24] sm:$0xf]
    %v166 = vld [vmem:[#allocation6 + $0x28] sm:$0xf]
    %v167 = vld [vmem:[#allocation6 + $0x2c] sm:$0xf]
    %v168 = vld [vmem:[#allocation6 + $0x30] sm:$0xf]
    %v169 = vld [vmem:[#allocation6 + $0x34] sm:$0xf]
    %v170 = vld [vmem:[#allocation6 + $0x38] sm:$0xf]
    %v171 = vld [vmem:[#allocation6 + $0x3c] sm:$0xf]
    %v172 = vld [vmem:[%s4] sm:$0x1]
    %v174 = vlaneseq
    %v175 = vshrl.u32 %v174, 7
    %v176 = vsub.s32 0, %v175
    %v177 = vrot.slane %v172, %v176
    %v195 = vunpack.c.l.b16 %v156
    %v196 = vunpack.c.l.b16 %v157
    %v197 = vunpack.c.l.b16 %v158
    %v198 = vunpack.c.l.b16 %v159
    %v199 = vunpack.c.l.b16 %v160
    %v200 = vunpack.c.l.b16 %v161
    %v201 = vunpack.c.l.b16 %v162
    %v202 = vunpack.c.l.b16 %v163
    %v203 = vunpack.c.l.b16 %v164
    %v204 = vunpack.c.l.b16 %v165
    %v205 = vunpack.c.l.b16 %v166
    %v206 = vunpack.c.l.b16 %v167
    %v207 = vunpack.c.l.b16 %v168
    %v208 = vunpack.c.l.b16 %v169
    %v209 = vunpack.c.l.b16 %v170
    %v210 = vunpack.c.l.b16 %v171
    %v211 = vpack.c.b16 %v196, %v195
    %v212 = vpack.c.b16 %v198, %v197
    %v213 = vpack.c.b16 %v200, %v199
    %v214 = vpack.c.b16 %v202, %v201
    %v215 = vpack.c.b16 %v204, %v203
    %v216 = vpack.c.b16 %v206, %v205
    %v217 = vpack.c.b16 %v208, %v207
    %v218 = vpack.c.b16 %v210, %v209
    %227 = vmatprep.subr.bf16.mxu0 0
    %228 = vmatpush1.bf16.msra.mxu0 %v211
    %229 = vmatprep.subr.bf16.mxu0 0
    %230 = vmatpush1.bf16.msra.mxu0 %v212
    %231 = vmatprep.subr.bf16.mxu0 0
    %232 = vmatpush1.bf16.msra.mxu0 %v213
    %233 = vmatprep.subr.bf16.mxu0 0
    %234 = vmatpush1.bf16.msra.mxu0 %v214
    %235 = vmatprep.subr.bf16.mxu0 0
    %236 = vmatpush1.bf16.msra.mxu0 %v215
    %237 = vmatprep.subr.bf16.mxu0 0
    %238 = vmatpush1.bf16.msra.mxu0 %v216
    %239 = vmatprep.subr.bf16.mxu0 0
    %240 = vmatpush1.bf16.msra.mxu0 %v217
    %241 = vmatprep.subr.bf16.mxu0 0
    %242 = vmatpush1.bf16.msra.mxu0 %v218
    %243 = vmatprep.subr.bf16.mxu0 0
    %244 = vmatpush1.bf16.msra.mxu0 0
    %245 = vmatprep.subr.bf16.mxu0 0
    %246 = vmatpush1.bf16.msra.mxu0 0
    %247 = vmatprep.subr.bf16.mxu0 0
    %248 = vmatpush1.bf16.msra.mxu0 0
    %249 = vmatprep.subr.bf16.mxu0 0
    %250 = vmatpush1.bf16.msra.mxu0 0
    %251 = vmatprep.subr.bf16.mxu0 0
    %252 = vmatpush1.bf16.msra.mxu0 0
    %253 = vmatprep.subr.bf16.mxu0 0
    %254 = vmatpush1.bf16.msra.mxu0 0
    %255 = vmatprep.subr.bf16.mxu0 0
    %256 = vmatpush1.bf16.msra.mxu0 0
    %257 = vmatprep.subr.bf16.mxu0 0
    %258 = vmatpush1.bf16.msra.mxu0 0
    %259 = vmatprep.mubr.bf16.mxu0 0
    %260 = vmatmul.mubr.bf16.gmra.mrb[0].mxu0 %v155
    %v261 = vpop.f32.mrb[0].mxu0
    %v262 = vadd.f32 %v177, %v261
    %v263 = vpop.f32.mrb[0].mxu0
    %v264 = vpop.f32.mrb[0].mxu0
    %v265 = vadd.f32 %v177, %v264
    %v266 = vpop.f32.mrb[0].mxu0
    %267 = vdwg.mxu0
    %v268 = vmax.f32 %v262, 0.0
    %v269 = vmax.f32 %v265, 0.0
    %v270 = vpack.c.bf16 %v269, %v268
    %v271 = vld [vmem:[#allocation7] sm:$0xf]
    %v272 = vld [vmem:[#allocation7 + $0x4] sm:$0xf]
    %v273 = vld [vmem:[#allocation7 + $0x8] sm:$0xf]
    %v274 = vld [vmem:[#allocation7 + $0xc] sm:$0xf]
    %v275 = vld [vmem:[#allocation7 + $0x10] sm:$0xf]
    %v276 = vld [vmem:[#allocation7 + $0x14] sm:$0xf]
    %v277 = vld [vmem:[#allocation7 + $0x18] sm:$0xf]
    %v278 = vld [vmem:[#allocation7 + $0x1c] sm:$0xf]
    %v279 = vld [vmem:[#allocation7 + $0x20] sm:$0xf]
    %v280 = vld [vmem:[#allocation7 + $0x24] sm:$0xf]
    %v281 = vld [vmem:[#allocation7 + $0x28] sm:$0xf]
    %v282 = vld [vmem:[#allocation7 + $0x2c] sm:$0xf]
    %v283 = vld [vmem:[#allocation7 + $0x30] sm:$0xf]
    %v284 = vld [vmem:[#allocation7 + $0x34] sm:$0xf]
    %v285 = vld [vmem:[#allocation7 + $0x38] sm:$0xf]
    %v286 = vld [vmem:[#allocation7 + $0x3c] sm:$0xf]
    %v287 = vld [vmem:[%s6] sm:$0x1]
    %v289 = vlaneseq
    %v290 = vshrl.u32 %v289, 7
    %v291 = vsub.s32 0, %v290
    %v292 = vrot.slane %v287, %v291
    %v310 = vunpack.c.l.b16 %v271
    %v311 = vunpack.c.l.b16 %v272
    %v312 = vunpack.c.l.b16 %v273
    %v313 = vunpack.c.l.b16 %v274
    %v314 = vunpack.c.l.b16 %v275
    %v315 = vunpack.c.l.b16 %v276
    %v316 = vunpack.c.l.b16 %v277
    %v317 = vunpack.c.l.b16 %v278
    %v318 = vunpack.c.l.b16 %v279
    %v319 = vunpack.c.l.b16 %v280
    %v320 = vunpack.c.l.b16 %v281
    %v321 = vunpack.c.l.b16 %v282
    %v322 = vunpack.c.l.b16 %v283
    %v323 = vunpack.c.l.b16 %v284
    %v324 = vunpack.c.l.b16 %v285
    %v325 = vunpack.c.l.b16 %v286
    %v326 = vpack.c.b16 %v311, %v310
    %v327 = vpack.c.b16 %v313, %v312
    %v328 = vpack.c.b16 %v315, %v314
    %v329 = vpack.c.b16 %v317, %v316
    %v330 = vpack.c.b16 %v319, %v318
    %v331 = vpack.c.b16 %v321, %v320
    %v332 = vpack.c.b16 %v323, %v322
    %v333 = vpack.c.b16 %v325, %v324
    %342 = vmatprep.subr.bf16.mxu0 0
    %343 = vmatpush1.bf16.msra.mxu0 %v326
    %344 = vmatprep.subr.bf16.mxu0 0
    %345 = vmatpush1.bf16.msra.mxu0 %v327
    %346 = vmatprep.subr.bf16.mxu0 0
    %347 = vmatpush1.bf16.msra.mxu0 %v328
    %348 = vmatprep.subr.bf16.mxu0 0
    %349 = vmatpush1.bf16.msra.mxu0 %v329
    %350 = vmatprep.subr.bf16.mxu0 0
    %351 = vmatpush1.bf16.msra.mxu0 %v330
    %352 = vmatprep.subr.bf16.mxu0 0
    %353 = vmatpush1.bf16.msra.mxu0 %v331
    %354 = vmatprep.subr.bf16.mxu0 0
    %355 = vmatpush1.bf16.msra.mxu0 %v332
    %356 = vmatprep.subr.bf16.mxu0 0
    %357 = vmatpush1.bf16.msra.mxu0 %v333
    %358 = vmatprep.subr.bf16.mxu0 0
    %359 = vmatpush1.bf16.msra.mxu0 0
    %360 = vmatprep.subr.bf16.mxu0 0
    %361 = vmatpush1.bf16.msra.mxu0 0
    %362 = vmatprep.subr.bf16.mxu0 0
    %363 = vmatpush1.bf16.msra.mxu0 0
    %364 = vmatprep.subr.bf16.mxu0 0
    %365 = vmatpush1.bf16.msra.mxu0 0
    %366 = vmatprep.subr.bf16.mxu0 0
    %367 = vmatpush1.bf16.msra.mxu0 0
    %368 = vmatprep.subr.bf16.mxu0 0
    %369 = vmatpush1.bf16.msra.mxu0 0
    %370 = vmatprep.subr.bf16.mxu0 0
    %371 = vmatpush1.bf16.msra.mxu0 0
    %372 = vmatprep.subr.bf16.mxu0 0
    %373 = vmatpush1.bf16.msra.mxu0 0
    %374 = vmatprep.mubr.bf16.mxu0 0
    %375 = vmatmul.mubr.bf16.gmra.mrb[0].mxu0 %v270
    %v376 = vpop.f32.mrb[0].mxu0
    %v377 = vadd.f32 %v292, %v376
    %v378 = vpop.f32.mrb[0].mxu0
    %v379 = vpop.f32.mrb[0].mxu0
    %v380 = vadd.f32 %v292, %v379
    %v381 = vpop.f32.mrb[0].mxu0
    %382 = vdwg.mxu0
    %vm383 = vcmask 7168
    %384 = vst.msk [vmem:[#allocation9] sm:$0xff] %vm383, %v377
    %385 = vst.msk [vmem:[#allocation9 + $0x8] sm:$0xff] %vm383, %v380
    // Predicated region
    $region46: #{tpu_custom_call.1} parent=1 // pred_check
      _
    $region47: #{tpu_custom_call.1} parent=1 // pred_check_branch
      %387 = sbr.rel (0) target = $region49
    $region48: #{tpu_custom_call.1} parent=1 // pred_region
      // Predicated region
      $region50: #{tpu_custom_call.1} parent=48 // pred_check
        _
      $region51: #{tpu_custom_call.1} parent=48 // pred_check_branch
        %389 = sbr.rel (0) target = $region53
      $region52: #{tpu_custom_call.1} parent=48 // pred_region
        // Predicated region
        $region54: #{tpu_custom_call.1} parent=52 // pred_check
          _
        $region55: #{tpu_custom_call.1} parent=52 // pred_check_branch
          %391 = sbr.rel (0) target = $region57
        $region56: #{tpu_custom_call.1} parent=52 // pred_region
          // Predicated region
          $region69: #{tpu_custom_call.1} parent=56 // pred_check
            _
          $region70: #{tpu_custom_call.1} parent=56 // pred_check_branch
            %406 = sbr.rel (0) target = $region72
          $region71: #{tpu_custom_call.1} parent=56 // pred_region
            loop: start=0, step=1, limit=1
            $region73: #{tpu_custom_call.1} parent=71 // loop_pre_header
              _
            $region74: #{tpu_custom_call.1} parent=71 // loop_header
              %s408 = sphi 0, %s412
              %p409 = scmp.ge.s32.totalorder %s408, 1
              %s413 = sphi [#allocation9], [#allocation9]
              %s414 = sphi %s7, %s7
            $region75: #{tpu_custom_call.1} parent=71 // loop_header_branch
              %411 = sbr.rel (%p409) target = $region79
            $region76: #{tpu_custom_call.1} parent=71 // loop_body
              %v415 = vld [vmem:[%s413] sm:$0xff]
              %416 = vst [vmem:[%s414] sm:$0xff] %v415
            $region77: #{tpu_custom_call.1} parent=71 // loop_footer
              %s412 = sadd.s32 1, %s408
            $region78: #{tpu_custom_call.1} parent=71 // loop_footer_branch
              %407 = sbr.rel target = $region74
            $region79: #{tpu_custom_call.1} parent=71 // loop_exit
              _
          $region72: #{tpu_custom_call.1} parent=56 // pred_fallthru
            _
          // Predicated region
          $region80: #{tpu_custom_call.1} parent=56 // pred_check
            _
          $region81: #{tpu_custom_call.1} parent=56 // pred_check_branch
            %418 = sbr.rel target = $region83
          $region82: #{tpu_custom_call.1} parent=56 // pred_region
            _
          $region83: #{tpu_custom_call.1} parent=56 // pred_fallthru
            _
        $region57: #{tpu_custom_call.1} parent=52 // pred_fallthru
          _
        // Predicated region
        $region58: #{tpu_custom_call.1} parent=52 // pred_check
          _
        $region59: #{tpu_custom_call.1} parent=52 // pred_check_branch
          %393 = sbr.rel target = $region61
        $region60: #{tpu_custom_call.1} parent=52 // pred_region
          loop: start=0, step=1, limit=1
          $region62: #{tpu_custom_call.1} parent=60 // loop_pre_header
            _
          $region63: #{tpu_custom_call.1} parent=60 // loop_header
            %s396 = sphi 0, %s400
            %p397 = scmp.ge.s32.totalorder %s396, 1
            %s401 = sphi [#allocation9], [#allocation9]
            %s402 = sphi %s7, %s7
          $region64: #{tpu_custom_call.1} parent=60 // loop_header_branch
            %399 = sbr.rel (%p397) target = $region68
          $region65: #{tpu_custom_call.1} parent=60 // loop_body
            %v403 = vld [vmem:[%s401] sm:$0xff]
            %404 = vst [vmem:[%s402] sm:$0xff] %v403
          $region66: #{tpu_custom_call.1} parent=60 // loop_footer
            %s400 = sadd.s32 1, %s396
          $region67: #{tpu_custom_call.1} parent=60 // loop_footer_branch
            %395 = sbr.rel target = $region63
          $region68: #{tpu_custom_call.1} parent=60 // loop_exit
            _
        $region61: #{tpu_custom_call.1} parent=52 // pred_fallthru
          _
      $region53: #{tpu_custom_call.1} parent=48 // pred_fallthru
        _
      %419 = vnop
    $region49: #{tpu_custom_call.1} parent=1 // pred_fallthru
      _
    // Predicated region
    $region84: #{tpu_custom_call.1} parent=1 // pred_check
      _
    $region85: #{tpu_custom_call.1} parent=1 // pred_check_branch
      %421 = sbr.rel (0) target = $region87
    $region86: #{tpu_custom_call.1} parent=1 // pred_region
      _
    $region87: #{tpu_custom_call.1} parent=1 // pred_fallthru
      _
    %422 = vsyncpa [#allocation3], 1
    %423 = vsyncpa [#allocation5], 1
    %424 = vsyncpa [#allocation8], 1

// kernel: tpu_custom_call.1
$region0: #{tpu_custom_call.1}
  #allocation0 [shape = 'u32[]', space=smem, size = 0x4, offset = 0x4, fixed_abs, tag = 'smem constant byte address 0x4 - core index']
  #allocation1 [shape = 'u32[144,128]{1,0:T(1,128)}', space=vmem, size = 0x12000, scoped, tag = 'internal scratch']
  %s0 = inlined_call_operand.hbm [shape: f32[8,32], index: 0, kind: input, shape index: {}]
  %s1 = inlined_call_operand.hbm [shape: bf16[32,128], index: 1, kind: input, shape index: {}]
  %s2 = inlined_call_operand.vmem [shape: f32[1,128], index: 2, kind: input, shape index: {}]
  %s3 = inlined_call_operand.hbm [shape: bf16[128,128], index: 3, kind: input, shape index: {}]
  %s4 = inlined_call_operand.vmem [shape: f32[1,128], index: 4, kind: input, shape index: {}]
  %s5 = inlined_call_operand.hbm [shape: bf16[128,128], index: 5, kind: input, shape index: {}]
  %s6 = inlined_call_operand.vmem [shape: f32[1,128], index: 6, kind: input, shape index: {}]
  %s7 = inlined_call_operand.vmem [shape: f32[8,1], index: 7, kind: output, shape index: {}]
  %s8 = sld [smem:[#allocation0]]
  $region88: #{tpu_custom_call.1} parent=0
    _
  %s10 = ssub.s32 1, %s8
  %s11 = scalar_select 0, %s10, %s8
  $region1: #{tpu_custom_call.1} parent=0
    #allocation2 [shape = 'u8[8192]{0}', space=vmem, size = 0x2000, scoped, tag = 'input window, operand 0, single buffered']
    #allocation3 [shape = 's32[1]{0}', space=sflag, size = 0x4, scoped, tag = 'scoped memory for tpu_custom_call.1']
    #allocation4 [shape = 'u8[8192]{0}', space=vmem, size = 0x2000, scoped, tag = 'input window, operand 1, single buffered']
    #allocation5 [shape = 's32[1]{0}', space=sflag, size = 0x4, scoped, tag = 'scoped memory for tpu_custom_call.1']
    #allocation6 [shape = 'u8[32768]{0}', space=vmem, size = 0x8000, scoped, tag = 'input window, operand 3, single buffered']
    #allocation7 [shape = 'u8[32768]{0}', space=vmem, size = 0x8000, scoped, tag = 'input window, operand 5, single buffered']
    #allocation8 [shape = 's32[1]{0}', space=sflag, size = 0x4, scoped, tag = 'scoped memory for tpu_custom_call.1']
    #allocation9 [shape = 'u8[8192]{0}', space=vmem, size = 0x2000, scoped, tag = 'output window, operand 0, single buffered']
    %12 = vsyncpa [#allocation3], 0
    %13 = vsyncpa [#allocation5], 0
    %14 = vsyncpa [#allocation8], 0
    // Predicated region
    $region2: #{tpu_custom_call.1} parent=1 // pred_check
      _
    $region3: #{tpu_custom_call.1} parent=1 // pred_check_branch
      %16 = sbr.rel (0) target = $region5
    $region4: #{tpu_custom_call.1} parent=1 // pred_region
      %s18 = ssub.s32 256, 128
      %19 = vsyncadd [#allocation3], %s18
      %s20 = sshll.u32 [#allocation2], 4
      %s21 = int_to_ptr.vmem [resolvable:$true] %s20
      %26 = dma.hbm_to_vmem [thread:$0]  %s0, 128, %s21, [#allocation3], 128, 128, 8
    $region5: #{tpu_custom_call.1} parent=1 // pred_fallthru
      _
    // Predicated region
    $region6: #{tpu_custom_call.1} parent=1 // pred_check
      _
    $region7: #{tpu_custom_call.1} parent=1 // pred_check_branch
      %28 = sbr.rel (0) target = $region9
    $region8: #{tpu_custom_call.1} parent=1 // pred_region
      %s30 = ssub.s32 256, 256
      %31 = vsyncadd [#allocation5], %s30
      %s32 = sshll.u32 [#allocation4], 4
      %s33 = int_to_ptr.vmem [resolvable:$true] %s32
      %38 = dma.hbm_to_vmem [thread:$0]  %s1, 256, %s33, [#allocation5], 64, 64, 4
    $region9: #{tpu_custom_call.1} parent=1 // pred_fallthru
      _
    // Predicated region
    $region10: #{tpu_custom_call.1} parent=1 // pred_check
      _
    $region11: #{tpu_custom_call.1} parent=1 // pred_check_branch
      %40 = sbr.rel (0) target = $region13
    $region12: #{tpu_custom_call.1} parent=1 // pred_region
      _
    $region13: #{tpu_custom_call.1} parent=1 // pred_fallthru
      _
    // Predicated region
    $region14: #{tpu_custom_call.1} parent=1 // pred_check
      _
    $region15: #{tpu_custom_call.1} parent=1 // pred_check_branch
      %42 = sbr.rel (0) target = $region17
    $region16: #{tpu_custom_call.1} parent=1 // pred_region
      %s44 = ssub.s32 1024, 1024
      %45 = vsyncadd [#allocation5], %s44
      %s46 = sshll.u32 [#allocation6], 4
      %s47 = int_to_ptr.vmem [resolvable:$true] %s46
      %52 = dma.hbm_to_vmem [thread:$0]  %s3, 1024, %s47, [#allocation5], 64, 64, 4
    $region17: #{tpu_custom_call.1} parent=1 // pred_fallthru
      _
    // Predicated region
    $region18: #{tpu_custom_call.1} parent=1 // pred_check
      _
    $region19: #{tpu_custom_call.1} parent=1 // pred_check_branch
      %54 = sbr.rel (0) target = $region21
    $region20: #{tpu_custom_call.1} parent=1 // pred_region
      _
    $region21: #{tpu_custom_call.1} parent=1 // pred_fallthru
      _
    // Predicated region
    $region22: #{tpu_custom_call.1} parent=1 // pred_check
      _
    $region23: #{tpu_custom_call.1} parent=1 // pred_check_branch
      %56 = sbr.rel (0) target = $region25
    $region24: #{tpu_custom_call.1} parent=1 // pred_region
      %s58 = ssub.s32 1024, 1024
      %59 = vsyncadd [#allocation8], %s58
      %s60 = sshll.u32 [#allocation7], 4
      %s61 = int_to_ptr.vmem [resolvable:$true] %s60
      %66 = dma.hbm_to_vmem [thread:$0]  %s5, 1024, %s61, [#allocation8], 64, 64, 4
    $region25: #{tpu_custom_call.1} parent=1 // pred_fallthru
      _
    // Predicated region
    $region26: #{tpu_custom_call.1} parent=1 // pred_check
      _
    $region27: #{tpu_custom_call.1} parent=1 // pred_check_branch
      %68 = sbr.rel (0) target = $region29
    $region28: #{tpu_custom_call.1} parent=1 // pred_region
      _
    $region29: #{tpu_custom_call.1} parent=1 // pred_fallthru
      _
    // Predicated region
    $region30: #{tpu_custom_call.1} parent=1 // pred_check
      _
    $region31: #{tpu_custom_call.1} parent=1 // pred_check_branch
      %70 = sbr.rel (0) target = $region33
    $region32: #{tpu_custom_call.1} parent=1 // pred_region
      %71 = dma.done [#allocation3], 256
    $region33: #{tpu_custom_call.1} parent=1 // pred_fallthru
      _
    // Predicated region
    $region34: #{tpu_custom_call.1} parent=1 // pred_check
      _
    $region35: #{tpu_custom_call.1} parent=1 // pred_check_branch
      %73 = sbr.rel (0) target = $region37
    $region36: #{tpu_custom_call.1} parent=1 // pred_region
      %74 = dma.done [#allocation5], 256
    $region37: #{tpu_custom_call.1} parent=1 // pred_fallthru
      _
    // Predicated region
    $region38: #{tpu_custom_call.1} parent=1 // pred_check
      _
    $region39: #{tpu_custom_call.1} parent=1 // pred_check_branch
      %76 = sbr.rel (0) target = $region41
    $region40: #{tpu_custom_call.1} parent=1 // pred_region
      %77 = dma.done [#allocation5], 1024
    $region41: #{tpu_custom_call.1} parent=1 // pred_fallthru
      _
    // Predicated region
    $region42: #{tpu_custom_call.1} parent=1 // pred_check
      _
    $region43: #{tpu_custom_call.1} parent=1 // pred_check_branch
      %79 = sbr.rel (0) target = $region45
    $region44: #{tpu_custom_call.1} parent=1 // pred_region
      %80 = dma.done [#allocation8], 1024
    $region45: #{tpu_custom_call.1} parent=1 // pred_fallthru
      _
    %v82 = vld [vmem:[#allocation2] sm:$0xff]
    %v83 = vld [vmem:[#allocation2 + $0x8] sm:$0xff]
    %v84 = vpack.c.bf16 %v83, %v82
    %v85 = vld [vmem:[#allocation4] sm:$0xf]
    %v86 = vld [vmem:[#allocation4 + $0x4] sm:$0xf]
    %v87 = vld [vmem:[#allocation4 + $0x8] sm:$0xf]
    %v88 = vld [vmem:[#allocation4 + $0xc] sm:$0xf]
    %v89 = vld [vmem:[%s2] sm:$0x1]
    %v91 = vlaneseq
    %v92 = vshrl.u32 %v91, 7
    %v93 = vsub.s32 0, %v92
    %v94 = vrot.slane %v89, %v93
    %v100 = vunpack.c.l.b16 %v85
    %v101 = vunpack.c.l.b16 %v86
    %v102 = vunpack.c.l.b16 %v87
    %v103 = vunpack.c.l.b16 %v88
    %v104 = vpack.c.b16 %v101, %v100
    %v105 = vpack.c.b16 %v103, %v102
    %vm108 = vcmask 261120
    %v110 = vsel %vm108, %v84, 0
    %112 = vmatprep.subr.bf16.mxu0 0
    %113 = vmatpush1.bf16.msra.mxu0 %v104
    %114 = vmatprep.subr.bf16.mxu0 0
    %115 = vmatpush1.bf16.msra.mxu0 %v105
    %116 = vmatprep.subr.bf16.mxu0 0
    %117 = vmatpush1.bf16.msra.mxu0 0
    %118 = vmatprep.subr.bf16.mxu0 0
    %119 = vmatpush1.bf16.msra.mxu0 0
    %120 = vmatprep.subr.bf16.mxu0 0
    %121 = vmatpush1.bf16.msra.mxu0 0
    %122 = vmatprep.subr.bf16.mxu0 0
    %123 = vmatpush1.bf16.msra.mxu0 0
    %124 = vmatprep.subr.bf16.mxu0 0
    %125 = vmatpush1.bf16.msra.mxu0 0
    %126 = vmatprep.subr.bf16.mxu0 0
    %127 = vmatpush1.bf16.msra.mxu0 0
    %128 = vmatprep.subr.bf16.mxu0 0
    %129 = vmatpush1.bf16.msra.mxu0 0
    %130 = vmatprep.subr.bf16.mxu0 0
    %131 = vmatpush1.bf16.msra.mxu0 0
    %132 = vmatprep.subr.bf16.mxu0 0
    %133 = vmatpush1.bf16.msra.mxu0 0
    %134 = vmatprep.subr.bf16.mxu0 0
    %135 = vmatpush1.bf16.msra.mxu0 0
    %136 = vmatprep.subr.bf16.mxu0 0
    %137 = vmatpush1.bf16.msra.mxu0 0
    %138 = vmatprep.subr.bf16.mxu0 0
    %139 = vmatpush1.bf16.msra.mxu0 0
    %140 = vmatprep.subr.bf16.mxu0 0
    %141 = vmatpush1.bf16.msra.mxu0 0
    %142 = vmatprep.subr.bf16.mxu0 0
    %143 = vmatpush1.bf16.msra.mxu0 0
    %144 = vmatprep.mubr.bf16.mxu0 0
    %145 = vmatmul.mubr.bf16.gmra.mrb[0].mxu0 %v110
    %v146 = vpop.f32.mrb[0].mxu0
    %v147 = vadd.f32 %v94, %v146
    %v148 = vpop.f32.mrb[0].mxu0
    %v149 = vpop.f32.mrb[0].mxu0
    %v150 = vadd.f32 %v94, %v149
    %v151 = vpop.f32.mrb[0].mxu0
    %152 = vdwg.mxu0
    %v153 = vmax.f32 %v147, 0.0
    %v154 = vmax.f32 %v150, 0.0
    %v155 = vpack.c.bf16 %v154, %v153
    %v156 = vld [vmem:[#allocation6] sm:$0xf]
    %v157 = vld [vmem:[#allocation6 + $0x4] sm:$0xf]
    %v158 = vld [vmem:[#allocation6 + $0x8] sm:$0xf]
    %v159 = vld [vmem:[#allocation6 + $0xc] sm:$0xf]
    %v160 = vld [vmem:[#allocation6 + $0x10] sm:$0xf]
    %v161 = vld [vmem:[#allocation6 + $0x14] sm:$0xf]
    %v162 = vld [vmem:[#allocation6 + $0x18] sm:$0xf]
    %v163 = vld [vmem:[#allocation6 + $0x1c] sm:$0xf]
    %v164 = vld [vmem:[#allocation6 + $0x20] sm:$0xf]
    %v165 = vld [vmem:[#allocation6 + $0x24] sm:$0xf]
    %v166 = vld [vmem:[#allocation6 + $0x28] sm:$0xf]
    %v167 = vld [vmem:[#allocation6 + $0x2c] sm:$0xf]
    %v168 = vld [vmem:[#allocation6 + $0x30] sm:$0xf]
    %v169 = vld [vmem:[#allocation6 + $0x34] sm:$0xf]
    %v170 = vld [vmem:[#allocation6 + $0x38] sm:$0xf]
    %v171 = vld [vmem:[#allocation6 + $0x3c] sm:$0xf]
    %v172 = vld [vmem:[%s4] sm:$0x1]
    %v174 = vlaneseq
    %v175 = vshrl.u32 %v174, 7
    %v176 = vsub.s32 0, %v175
    %v177 = vrot.slane %v172, %v176
    %v195 = vunpack.c.l.b16 %v156
    %v196 = vunpack.c.l.b16 %v157
    %v197 = vunpack.c.l.b16 %v158
    %v198 = vunpack.c.l.b16 %v159
    %v199 = vunpack.c.l.b16 %v160
    %v200 = vunpack.c.l.b16 %v161
    %v201 = vunpack.c.l.b16 %v162
    %v202 = vunpack.c.l.b16 %v163
    %v203 = vunpack.c.l.b16 %v164
    %v204 = vunpack.c.l.b16 %v165
    %v205 = vunpack.c.l.b16 %v166
    %v206 = vunpack.c.l.b16 %v167
    %v207 = vunpack.c.l.b16 %v168
    %v208 = vunpack.c.l.b16 %v169
    %v209 = vunpack.c.l.b16 %v170
    %v210 = vunpack.c.l.b16 %v171
    %v211 = vpack.c.b16 %v196, %v195
    %v212 = vpack.c.b16 %v198, %v197
    %v213 = vpack.c.b16 %v200, %v199
    %v214 = vpack.c.b16 %v202, %v201
    %v215 = vpack.c.b16 %v204, %v203
    %v216 = vpack.c.b16 %v206, %v205
    %v217 = vpack.c.b16 %v208, %v207
    %v218 = vpack.c.b16 %v210, %v209
    %227 = vmatprep.subr.bf16.mxu0 0
    %228 = vmatpush1.bf16.msra.mxu0 %v211
    %229 = vmatprep.subr.bf16.mxu0 0
    %230 = vmatpush1.bf16.msra.mxu0 %v212
    %231 = vmatprep.subr.bf16.mxu0 0
    %232 = vmatpush1.bf16.msra.mxu0 %v213
    %233 = vmatprep.subr.bf16.mxu0 0
    %234 = vmatpush1.bf16.msra.mxu0 %v214
    %235 = vmatprep.subr.bf16.mxu0 0
    %236 = vmatpush1.bf16.msra.mxu0 %v215
    %237 = vmatprep.subr.bf16.mxu0 0
    %238 = vmatpush1.bf16.msra.mxu0 %v216
    %239 = vmatprep.subr.bf16.mxu0 0
    %240 = vmatpush1.bf16.msra.mxu0 %v217
    %241 = vmatprep.subr.bf16.mxu0 0
    %242 = vmatpush1.bf16.msra.mxu0 %v218
    %243 = vmatprep.subr.bf16.mxu0 0
    %244 = vmatpush1.bf16.msra.mxu0 0
    %245 = vmatprep.subr.bf16.mxu0 0
    %246 = vmatpush1.bf16.msra.mxu0 0
    %247 = vmatprep.subr.bf16.mxu0 0
    %248 = vmatpush1.bf16.msra.mxu0 0
    %249 = vmatprep.subr.bf16.mxu0 0
    %250 = vmatpush1.bf16.msra.mxu0 0
    %251 = vmatprep.subr.bf16.mxu0 0
    %252 = vmatpush1.bf16.msra.mxu0 0
    %253 = vmatprep.subr.bf16.mxu0 0
    %254 = vmatpush1.bf16.msra.mxu0 0
    %255 = vmatprep.subr.bf16.mxu0 0
    %256 = vmatpush1.bf16.msra.mxu0 0
    %257 = vmatprep.subr.bf16.mxu0 0
    %258 = vmatpush1.bf16.msra.mxu0 0
    %259 = vmatprep.mubr.bf16.mxu0 0
    %260 = vmatmul.mubr.bf16.gmra.mrb[0].mxu0 %v155
    %v261 = vpop.f32.mrb[0].mxu0
    %v262 = vadd.f32 %v177, %v261
    %v263 = vpop.f32.mrb[0].mxu0
    %v264 = vpop.f32.mrb[0].mxu0
    %v265 = vadd.f32 %v177, %v264
    %v266 = vpop.f32.mrb[0].mxu0
    %267 = vdwg.mxu0
    %v268 = vmax.f32 %v262, 0.0
    %v269 = vmax.f32 %v265, 0.0
    %v270 = vpack.c.bf16 %v269, %v268
    %v271 = vld [vmem:[#allocation7] sm:$0xf]
    %v272 = vld [vmem:[#allocation7 + $0x4] sm:$0xf]
    %v273 = vld [vmem:[#allocation7 + $0x8] sm:$0xf]
    %v274 = vld [vmem:[#allocation7 + $0xc] sm:$0xf]
    %v275 = vld [vmem:[#allocation7 + $0x10] sm:$0xf]
    %v276 = vld [vmem:[#allocation7 + $0x14] sm:$0xf]
    %v277 = vld [vmem:[#allocation7 + $0x18] sm:$0xf]
    %v278 = vld [vmem:[#allocation7 + $0x1c] sm:$0xf]
    %v279 = vld [vmem:[#allocation7 + $0x20] sm:$0xf]
    %v280 = vld [vmem:[#allocation7 + $0x24] sm:$0xf]
    %v281 = vld [vmem:[#allocation7 + $0x28] sm:$0xf]
    %v282 = vld [vmem:[#allocation7 + $0x2c] sm:$0xf]
    %v283 = vld [vmem:[#allocation7 + $0x30] sm:$0xf]
    %v284 = vld [vmem:[#allocation7 + $0x34] sm:$0xf]
    %v285 = vld [vmem:[#allocation7 + $0x38] sm:$0xf]
    %v286 = vld [vmem:[#allocation7 + $0x3c] sm:$0xf]
    %v287 = vld [vmem:[%s6] sm:$0x1]
    %v289 = vlaneseq
    %v290 = vshrl.u32 %v289, 7
    %v291 = vsub.s32 0, %v290
    %v292 = vrot.slane %v287, %v291
    %v310 = vunpack.c.l.b16 %v271
    %v311 = vunpack.c.l.b16 %v272
    %v312 = vunpack.c.l.b16 %v273
    %v313 = vunpack.c.l.b16 %v274
    %v314 = vunpack.c.l.b16 %v275
    %v315 = vunpack.c.l.b16 %v276
    %v316 = vunpack.c.l.b16 %v277
    %v317 = vunpack.c.l.b16 %v278
    %v318 = vunpack.c.l.b16 %v279
    %v319 = vunpack.c.l.b16 %v280
    %v320 = vunpack.c.l.b16 %v281
    %v321 = vunpack.c.l.b16 %v282
    %v322 = vunpack.c.l.b16 %v283
    %v323 = vunpack.c.l.b16 %v284
    %v324 = vunpack.c.l.b16 %v285
    %v325 = vunpack.c.l.b16 %v286
    %v326 = vpack.c.b16 %v311, %v310
    %v327 = vpack.c.b16 %v313, %v312
    %v328 = vpack.c.b16 %v315, %v314
    %v329 = vpack.c.b16 %v317, %v316
    %v330 = vpack.c.b16 %v319, %v318
    %v331 = vpack.c.b16 %v321, %v320
    %v332 = vpack.c.b16 %v323, %v322
    %v333 = vpack.c.b16 %v325, %v324
    %342 = vmatprep.subr.bf16.mxu0 0
    %343 = vmatpush1.bf16.msra.mxu0 %v326
    %344 = vmatprep.subr.bf16.mxu0 0
    %345 = vmatpush1.bf16.msra.mxu0 %v327
    %346 = vmatprep.subr.bf16.mxu0 0
    %347 = vmatpush1.bf16.msra.mxu0 %v328
    %348 = vmatprep.subr.bf16.mxu0 0
    %349 = vmatpush1.bf16.msra.mxu0 %v329
    %350 = vmatprep.subr.bf16.mxu0 0
    %351 = vmatpush1.bf16.msra.mxu0 %v330
    %352 = vmatprep.subr.bf16.mxu0 0
    %353 = vmatpush1.bf16.msra.mxu0 %v331
    %354 = vmatprep.subr.bf16.mxu0 0
    %355 = vmatpush1.bf16.msra.mxu0 %v332
    %356 = vmatprep.subr.bf16.mxu0 0
    %357 = vmatpush1.bf16.msra.mxu0 %v333
    %358 = vmatprep.subr.bf16.mxu0 0
    %359 = vmatpush1.bf16.msra.mxu0 0
    %360 = vmatprep.subr.bf16.mxu0 0
    %361 = vmatpush1.bf16.msra.mxu0 0
    %362 = vmatprep.subr.bf16.mxu0 0
    %363 = vmatpush1.bf16.msra.mxu0 0
    %364 = vmatprep.subr.bf16.mxu0 0
    %365 = vmatpush1.bf16.msra.mxu0 0
    %366 = vmatprep.subr.bf16.mxu0 0
    %367 = vmatpush1.bf16.msra.mxu0 0
    %368 = vmatprep.subr.bf16.mxu0 0
    %369 = vmatpush1.bf16.msra.mxu0 0
    %370 = vmatprep.subr.bf16.mxu0 0
    %371 = vmatpush1.bf16.msra.mxu0 0
    %372 = vmatprep.subr.bf16.mxu0 0
    %373 = vmatpush1.bf16.msra.mxu0 0
    %374 = vmatprep.mubr.bf16.mxu0 0
    %375 = vmatmul.mubr.bf16.gmra.mrb[0].mxu0 %v270
    %v376 = vpop.f32.mrb[0].mxu0
    %v377 = vadd.f32 %v292, %v376
    %v378 = vpop.f32.mrb[0].mxu0
    %v379 = vpop.f32.mrb[0].mxu0
    %v380 = vadd.f32 %v292, %v379
    %v381 = vpop.f32.mrb[0].mxu0
    %382 = vdwg.mxu0
    %vm383 = vcmask 7168
    %384 = vst.msk [vmem:[#allocation9] sm:$0xff] %vm383, %v377
    %385 = vst.msk [vmem:[#allocation9 + $0x8] sm:$0xff] %vm383, %v380
    // Predicated region
    $region46: #{tpu_custom_call.1} parent=1 // pred_check
      _
    $region47: #{tpu_custom_call.1} parent=1 // pred_check_branch
      %387 = sbr.rel (0) target = $region49
    $region48: #{tpu_custom_call.1} parent=1 // pred_region
      // Predicated region
      $region50: #{tpu_custom_call.1} parent=48 // pred_check
        _
      $region51: #{tpu_custom_call.1} parent=48 // pred_check_branch
        %389 = sbr.rel (0) target = $region53
      $region52: #{tpu_custom_call.1} parent=48 // pred_region
        // Predicated region
        $region54: #{tpu_custom_call.1} parent=52 // pred_check
          _
        $region55: #{tpu_custom_call.1} parent=52 // pred_check_branch
          %391 = sbr.rel (0) target = $region57
        $region56: #{tpu_custom_call.1} parent=52 // pred_region
          // Predicated region
          $region69: #{tpu_custom_call.1} parent=56 // pred_check
            _
          $region70: #{tpu_custom_call.1} parent=56 // pred_check_branch
            %406 = sbr.rel (0) target = $region72
          $region71: #{tpu_custom_call.1} parent=56 // pred_region
            loop: start=0, step=1, limit=1
            $region73: #{tpu_custom_call.1} parent=71 // loop_pre_header
              _
            $region74: #{tpu_custom_call.1} parent=71 // loop_header
              %s408 = sphi 0, %s412
              %p409 = scmp.ge.s32.totalorder %s408, 1
              %s413 = sphi [#allocation9], [#allocation9]
              %s414 = sphi %s7, %s7
            $region75: #{tpu_custom_call.1} parent=71 // loop_header_branch
              %411 = sbr.rel (%p409) target = $region79
            $region76: #{tpu_custom_call.1} parent=71 // loop_body
              %v415 = vld [vmem:[%s413] sm:$0xff]
              %416 = vst [vmem:[%s414] sm:$0xff] %v415
            $region77: #{tpu_custom_call.1} parent=71 // loop_footer
              %s412 = sadd.s32 1, %s408
            $region78: #{tpu_custom_call.1} parent=71 // loop_footer_branch
              %407 = sbr.rel target = $region74
            $region79: #{tpu_custom_call.1} parent=71 // loop_exit
              _
          $region72: #{tpu_custom_call.1} parent=56 // pred_fallthru
            _
          // Predicated region
          $region80: #{tpu_custom_call.1} parent=56 // pred_check
            _
          $region81: #{tpu_custom_call.1} parent=56 // pred_check_branch
            %418 = sbr.rel target = $region83
          $region82: #{tpu_custom_call.1} parent=56 // pred_region
            _
          $region83: #{tpu_custom_call.1} parent=56 // pred_fallthru
            _
        $region57: #{tpu_custom_call.1} parent=52 // pred_fallthru
          _
        // Predicated region
        $region58: #{tpu_custom_call.1} parent=52 // pred_check
          _
        $region59: #{tpu_custom_call.1} parent=52 // pred_check_branch
          %393 = sbr.rel target = $region61
        $region60: #{tpu_custom_call.1} parent=52 // pred_region
          loop: start=0, step=1, limit=1
          $region62: #{tpu_custom_call.1} parent=60 // loop_pre_header
            _
          $region63: #{tpu_custom_call.1} parent=60 // loop_header
            %s396 = sphi 0, %s400
            %p397 = scmp.ge.s32.totalorder %s396, 1
            %s401 = sphi [#allocation9], [#allocation9]
            %s402 = sphi %s7, %s7
          $region64: #{tpu_custom_call.1} parent=60 // loop_header_branch
            %399 = sbr.rel (%p397) target = $region68
          $region65: #{tpu_custom_call.1} parent=60 // loop_body
            %v403 = vld [vmem:[%s401] sm:$0xff]
            %404 = vst [vmem:[%s402] sm:$0xff] %v403
          $region66: #{tpu_custom_call.1} parent=60 // loop_footer
            %s400 = sadd.s32 1, %s396
          $region67: #{tpu_custom_call.1} parent=60 // loop_footer_branch
            %395 = sbr.rel target = $region63
          $region68: #{tpu_custom_call.1} parent=60 // loop_exit
            _
        $region61: #{tpu_custom_call.1} parent=52 // pred_fallthru
          _
      $region53: #{tpu_custom_call.1} parent=48 // pred_fallthru
        _
      %419 = vnop
    $region49: #{tpu_custom_call.1} parent=1 // pred_fallthru
      _
    // Predicated region
    $region84: #{tpu_custom_call.1} parent=1 // pred_check
      _
    $region85: #{tpu_custom_call.1} parent=1 // pred_check_branch
      %421 = sbr.rel (0) target = $region87
    $region86: #{tpu_custom_call.1} parent=1 // pred_region
      _
    $region87: #{tpu_custom_call.1} parent=1 // pred_fallthru
      _
    %422 = vsyncpa [#allocation3], 1
    %423 = vsyncpa [#allocation5], 1
    %424 = vsyncpa [#allocation8], 1

</llo_original>
